<compile_context>
chip_gen: v6e
topology: v6e:2x2x1
jax: 0.10.0
libtpu: 0.0.40
codegen_flags: <defaults>
</compile_context>

<pallas_src>
import math
import numpy as np
import jax
import jax.numpy as jnp
from jax.experimental import pallas as pl
from jax.experimental.pallas import tpu as pltpu


# ----------------------------- Pallas kernel ------------------------------ #
def _fused_patch_embed_kernel(x1_ref, m1_ref, b1_ref,
                              x2_ref, m2_ref, b2_ref,
                              x3_ref, m3_ref, b3_ref,
                              o1_ref, o2_ref, o3_ref):
    # One MXU GEMM per branch over the whole batch, plus a bias add.
    #   x_i : (B, N_i*3*P_i)   m_i : (N_i*3*P_i, N_i*D)   b_i : (1, N_i*D)
    o1_ref[...] = (jnp.dot(x1_ref[...], m1_ref[...],
                           preferred_element_type=jnp.float32) + b1_ref[...])
    o2_ref[...] = (jnp.dot(x2_ref[...], m2_ref[...],
                           preferred_element_type=jnp.float32) + b2_ref[...])
    o3_ref[...] = (jnp.dot(x3_ref[...], m3_ref[...],
                           preferred_element_type=jnp.float32) + b3_ref[...])


def _full_spec(shape):
    # Full-array block (legal regardless of (8,128) since block == array extent).
    return pl.BlockSpec(shape, lambda i: (0,) * len(shape))


def fused_patch_embed(x1, m1, b1, x2, m2, b2, x3, m3, b3):
    """Single-launch, single-grid-step fused embedding for all three branches.

    Returns (o1, o2, o3) with o_i of shape (B, N_i*D) (lane-dense)."""
    B = x1.shape[0]
    operands = (x1, m1, b1, x2, m2, b2, x3, m3, b3)
    out_shape = (
        jax.ShapeDtypeStruct((B, m1.shape[1]), jnp.float32),
        jax.ShapeDtypeStruct((B, m2.shape[1]), jnp.float32),
        jax.ShapeDtypeStruct((B, m3.shape[1]), jnp.float32),
    )
    return pl.pallas_call(
        _fused_patch_embed_kernel,
        out_shape=out_shape,
        grid=(1,),                       # whole batch + all branches in one step
        in_specs=[_full_spec(a.shape) for a in operands],
        out_specs=tuple(_full_spec(s.shape) for s in out_shape),
        compiler_params=pltpu.CompilerParams(dimension_semantics=("arbitrary",)),
    )(*operands)


# ------------------------------- JAX glue --------------------------------- #
def replication_pad_unfold(x, patch_len, stride):
    """x: (B, L) -> patches (B, N, patch_len); replicate-pad `stride` on the right."""
    pad = jnp.repeat(x[:, -1:], stride, axis=1)
    xp = jnp.concatenate([x, pad], axis=1)
    n = (xp.shape[1] - patch_len) // stride + 1
    idx = jnp.arange(n)[:, None] * stride + jnp.arange(patch_len)[None, :]
    return xp[:, idx]                                     # (B, N, patch_len)


def im2col_3tap(patches):
    """(B, N, P) -> (B, N*3P); taps ordered [x[n-1], x[n], x[n+1]] (circular)."""
    xm1 = jnp.roll(patches, 1, axis=1)
    xp1 = jnp.roll(patches, -1, axis=1)
    x3 = jnp.concatenate([xm1, patches, xp1], axis=-1)    # (B, N, 3P)
    B, N, threeP = x3.shape
    return x3.reshape(B, N * threeP)


def positional_embedding_table(n, d_model):
    position = np.arange(n, dtype=np.float32)[:, None]
    div_term = np.exp(np.arange(0, d_model, 2, dtype=np.float32)
                      * -(math.log(10000.0) / d_model))
    pe = np.zeros((n, d_model), np.float32)
    pe[:, 0::2] = np.sin(position * div_term)
    pe[:, 1::2] = np.cos(position * div_term)
    return jnp.asarray(pe)


def init_branch_params(key, patch_len, stride, patch_num, d_model):
    k1, k2, k3 = jax.random.split(key, 3)
    # TokenEmbedding Conv1d weight, PyTorch layout (D, P, 3) -> stacked (3, P, D);
    # tap k=0 pairs with x[n-1] (circular padding, kernel_size=3, padding=1).
    w_torch = 0.1 * jax.random.normal(k1, (d_model, patch_len, 3), jnp.float32)
    w_tok = jnp.stack([w_torch[:, :, k].T for k in range(3)], axis=0)   # (3, P, D)
    # channel_embedding Conv1d(patch_num, patch_num, k=1) weight/bias.
    cw = 0.1 * jax.random.normal(k2, (patch_num, patch_num), jnp.float32)
    cb = 0.1 * jax.random.normal(k3, (patch_num, 1), jnp.float32)
    pe = positional_embedding_table(patch_num, d_model)

    # One-time parameter fold (batch-invariant):
    #   out = cw @ (X3 @ Wcat + pe) + cb  is affine in X3, so compose into a single
    #   operator:  op_M[(i,j),(o,d)] = cw[o,i] * Wcat[j,d],  op_bias = cw @ pe + cb.
    threeP = 3 * patch_len
    w_cat = w_tok.reshape(threeP, d_model)                              # (3P, D)
    op_M = jnp.einsum("oi,jd->ijod", cw, w_cat).reshape(
        patch_num * threeP, patch_num * d_model)                        # (N*3P, N*D)
    op_bias = (cw @ pe + cb).reshape(1, patch_num * d_model)            # (1, N*D)

    return dict(patch_len=patch_len, stride=stride, patch_num=patch_num,
                d_model=d_model, w_tok=w_tok, cw=cw, cb=cb, pe=pe,
                op_M=op_M, op_bias=op_bias)


def tmp_patch_embedding_forward(c, params):
    """c: (B0, B1, 5, L) -> (ct, c1, c2, c3, cr) matching the PyTorch module."""
    B0, B1, C, L = c.shape
    c = c.reshape(B0 * B1, C, L)
    ct, x1, x2, x3, cr = c[:, 0], c[:, 1], c[:, 2], c[:, 3], c[:, 4]

    xs = []
    for x, name in ((x1, "b1"), (x2, "b2"), (x3, "b3")):
        p = params[name]
        patches = replication_pad_unfold(x, p["patch_len"], p["stride"])
        xs.append(im2col_3tap(patches))                                 # (B, N*3P)

    p1, p2, p3 = params["b1"], params["b2"], params["b3"]
    o1, o2, o3 = fused_patch_embed(
        xs[0], p1["op_M"], p1["op_bias"],
        xs[1], p2["op_M"], p2["op_bias"],
        xs[2], p3["op_M"], p3["op_bias"])

    B = B0 * B1
    c1 = o1.reshape(B, p1["patch_num"], p1["d_model"])
    c2 = o2.reshape(B, p2["patch_num"], p2["d_model"])
    c3 = o3.reshape(B, p3["patch_num"], p3["d_model"])
    return ct, c1, c2, c3, cr


# --------------------------- pure-JAX reference ---------------------------- #
def _branch_ref(x, p):
    patches = replication_pad_unfold(x, p["patch_len"], p["stride"])    # (B, N, P)
    xm1 = jnp.roll(patches, 1, axis=1)
    xp1 = jnp.roll(patches, -1, axis=1)
    ve = (jnp.einsum("bnp,pd->bnd", xm1, p["w_tok"][0])
          + jnp.einsum("bnp,pd->bnd", patches, p["w_tok"][1])
          + jnp.einsum("bnp,pd->bnd", xp1, p["w_tok"][2]))
    y = ve + p["pe"][None]
    return jnp.einsum("oi,bid->bod", p["cw"], y) + p["cb"][None]


# --------------------------------- main ------------------------------------ #
if __name__ == "__main__":
    d_model = 32
    L = 32
    # (patch_len, stride, patch_num); patch_num = (L + stride - patch_len)//stride + 1
    cfg = {"b1": (8, 4, 8), "b2": (16, 8, 4), "b3": (4, 2, 16)}

    key = jax.random.PRNGKey(0)
    kx, k1, k2, k3 = jax.random.split(key, 4)

    params = {
        "b1": init_branch_params(k1, *cfg["b1"], d_model),
        "b2": init_branch_params(k2, *cfg["b2"], d_model),
        "b3": init_branch_params(k3, *cfg["b3"], d_model),
    }

    # input: (B0, B1, 5, L) — 5 channels as required by the module's slicing
    c = jax.random.normal(kx, (2, 3, 5, L), jnp.float32)

    ct, c1, c2, c3, cr = tmp_patch_embedding_forward(c, params)
    jax.block_until_ready((ct, c1, c2, c3, cr))

    # sanity checks against a pure-JAX reference
    cf = c.reshape(6, 5, L)
    np.testing.assert_allclose(np.asarray(ct), np.asarray(cf[:, 0]), rtol=0, atol=0)
    np.testing.assert_allclose(np.asarray(cr), np.asarray(cf[:, 4]), rtol=0, atol=0)
    for out, x, name in ((c1, cf[:, 1], "b1"), (c2, cf[:, 2], "b2"), (c3, cf[:, 3], "b3")):
        ref = _branch_ref(x, params[name])
        np.testing.assert_allclose(np.asarray(out), np.asarray(ref), rtol=1e-2, atol=1e-2)

    assert c1.shape == (6, cfg["b1"][2], d_model)
    assert c2.shape == (6, cfg["b2"][2], d_model)
    assert c3.shape == (6, cfg["b3"][2], d_model)

    print("KERNEL_OK")
</pallas_src>

<mosaic_0001>
module attributes {stable_mosaic.version = 11 : i64} {
  func.func @_fused_patch_embed_kernel(%arg0: i32, %arg1: memref<6x192xf32, #tpu.memory_space<vmem>>, %arg2: memref<192x256xf32, #tpu.memory_space<vmem>>, %arg3: memref<1x256xf32, #tpu.memory_space<vmem>>, %arg4: memref<6x192xf32, #tpu.memory_space<vmem>>, %arg5: memref<192x128xf32, #tpu.memory_space<vmem>>, %arg6: memref<1x128xf32, #tpu.memory_space<vmem>>, %arg7: memref<6x192xf32, #tpu.memory_space<vmem>>, %arg8: memref<192x512xf32, #tpu.memory_space<vmem>>, %arg9: memref<1x512xf32, #tpu.memory_space<vmem>>, %arg10: memref<6x256xf32, #tpu.memory_space<vmem>>, %arg11: memref<6x128xf32, #tpu.memory_space<vmem>>, %arg12: memref<6x512xf32, #tpu.memory_space<vmem>>) attributes {dimension_semantics = [#tpu.dimension_semantics<arbitrary>], iteration_bounds = array<i64: 1>, scalar_prefetch = 0 : i64, scratch_operands = 0 : i64, tpu.core_type = #tpu.core_type<tc>, window_params = [{pipeline_mode = #tpu.pipeline_mode<synchronous>, transform_indices = @transform_0, window_bounds = array<i64: 6, 192>}, {pipeline_mode = #tpu.pipeline_mode<synchronous>, transform_indices = @transform_1, window_bounds = array<i64: 192, 256>}, {pipeline_mode = #tpu.pipeline_mode<synchronous>, transform_indices = @transform_2, window_bounds = array<i64: 1, 256>}, {pipeline_mode = #tpu.pipeline_mode<synchronous>, transform_indices = @transform_3, window_bounds = array<i64: 6, 192>}, {pipeline_mode = #tpu.pipeline_mode<synchronous>, transform_indices = @transform_4, window_bounds = array<i64: 192, 128>}, {pipeline_mode = #tpu.pipeline_mode<synchronous>, transform_indices = @transform_5, window_bounds = array<i64: 1, 128>}, {pipeline_mode = #tpu.pipeline_mode<synchronous>, transform_indices = @transform_6, window_bounds = array<i64: 6, 192>}, {pipeline_mode = #tpu.pipeline_mode<synchronous>, transform_indices = @transform_7, window_bounds = array<i64: 192, 512>}, {pipeline_mode = #tpu.pipeline_mode<synchronous>, transform_indices = @transform_8, window_bounds = array<i64: 1, 512>}, {pipeline_mode = #tpu.pipeline_mode<synchronous>, transform_indices = @transform_9, window_bounds = array<i64: 6, 256>}, {pipeline_mode = #tpu.pipeline_mode<synchronous>, transform_indices = @transform_10, window_bounds = array<i64: 6, 128>}, {pipeline_mode = #tpu.pipeline_mode<synchronous>, transform_indices = @transform_11, window_bounds = array<i64: 6, 512>}]} {
    %c0 = arith.constant 0 : index
    %c0_0 = arith.constant 0 : index
    %0 = vector.load %arg1[%c0, %c0_0] : memref<6x192xf32, #tpu.memory_space<vmem>>, vector<6x192xf32>
    %c0_1 = arith.constant 0 : index
    %c0_2 = arith.constant 0 : index
    %1 = vector.load %arg2[%c0_1, %c0_2] : memref<192x256xf32, #tpu.memory_space<vmem>>, vector<192x256xf32>
    %cst = arith.constant dense<0.000000e+00> : vector<6x256xf32>
    %2 = tpu.matmul %0, %1, %cst {dimension_numbers = #tpu.dot_dimension_numbers<[1], [0], [0], [1], [0, 0, 1, 1], [], []>} : vector<6x192xf32>, vector<192x256xf32>, vector<6x256xf32> -> vector<6x256xf32>
    %c0_3 = arith.constant 0 : index
    %c0_4 = arith.constant 0 : index
    %3 = vector.load %arg3[%c0_3, %c0_4] : memref<1x256xf32, #tpu.memory_space<vmem>>, vector<1x256xf32>
    %4 = vector.broadcast %3 : vector<1x256xf32> to vector<6x256xf32>
    %5 = arith.addf %2, %4 : vector<6x256xf32>
    %c0_5 = arith.constant 0 : index
    %c0_6 = arith.constant 0 : index
    %6 = vector.load %arg10[%c0_5, %c0_6] : memref<6x256xf32, #tpu.memory_space<vmem>>, vector<6x256xf32>
    tpu.vector_store %arg10[%c0_5, %c0_6], %5 {strides = array<i32>} : memref<6x256xf32, #tpu.memory_space<vmem>>, vector<6x256xf32>,
    %c0_7 = arith.constant 0 : index
    %c0_8 = arith.constant 0 : index
    %7 = vector.load %arg4[%c0_7, %c0_8] : memref<6x192xf32, #tpu.memory_space<vmem>>, vector<6x192xf32>
    %c0_9 = arith.constant 0 : index
    %c0_10 = arith.constant 0 : index
    %8 = vector.load %arg5[%c0_9, %c0_10] : memref<192x128xf32, #tpu.memory_space<vmem>>, vector<192x128xf32>
    %cst_11 = arith.constant dense<0.000000e+00> : vector<6x128xf32>
    %9 = tpu.matmul %7, %8, %cst_11 {dimension_numbers = #tpu.dot_dimension_numbers<[1], [0], [0], [1], [0, 0, 1, 1], [], []>} : vector<6x192xf32>, vector<192x128xf32>, vector<6x128xf32> -> vector<6x128xf32>
    %c0_12 = arith.constant 0 : index
    %c0_13 = arith.constant 0 : index
    %10 = vector.load %arg6[%c0_12, %c0_13] : memref<1x128xf32, #tpu.memory_space<vmem>>, vector<1x128xf32>
    %11 = vector.broadcast %10 : vector<1x128xf32> to vector<6x128xf32>
    %12 = arith.addf %9, %11 : vector<6x128xf32>
    %c0_14 = arith.constant 0 : index
    %c0_15 = arith.constant 0 : index
    %13 = vector.load %arg11[%c0_14, %c0_15] : memref<6x128xf32, #tpu.memory_space<vmem>>, vector<6x128xf32>
    tpu.vector_store %arg11[%c0_14, %c0_15], %12 {strides = array<i32>} : memref<6x128xf32, #tpu.memory_space<vmem>>, vector<6x128xf32>,
    %c0_16 = arith.constant 0 : index
    %c0_17 = arith.constant 0 : index
    %14 = vector.load %arg7[%c0_16, %c0_17] : memref<6x192xf32, #tpu.memory_space<vmem>>, vector<6x192xf32>
    %c0_18 = arith.constant 0 : index
    %c0_19 = arith.constant 0 : index
    %15 = vector.load %arg8[%c0_18, %c0_19] : memref<192x512xf32, #tpu.memory_space<vmem>>, vector<192x512xf32>
    %cst_20 = arith.constant dense<0.000000e+00> : vector<6x512xf32>
    %16 = tpu.matmul %14, %15, %cst_20 {dimension_numbers = #tpu.dot_dimension_numbers<[1], [0], [0], [1], [0, 0, 1, 1], [], []>} : vector<6x192xf32>, vector<192x512xf32>, vector<6x512xf32> -> vector<6x512xf32>
    %c0_21 = arith.constant 0 : index
    %c0_22 = arith.constant 0 : index
    %17 = vector.load %arg9[%c0_21, %c0_22] : memref<1x512xf32, #tpu.memory_space<vmem>>, vector<1x512xf32>
    %18 = vector.broadcast %17 : vector<1x512xf32> to vector<6x512xf32>
    %19 = arith.addf %16, %18 : vector<6x512xf32>
    %c0_23 = arith.constant 0 : index
    %c0_24 = arith.constant 0 : index
    %20 = vector.load %arg12[%c0_23, %c0_24] : memref<6x512xf32, #tpu.memory_space<vmem>>, vector<6x512xf32>
    tpu.vector_store %arg12[%c0_23, %c0_24], %19 {strides = array<i32>} : memref<6x512xf32, #tpu.memory_space<vmem>>, vector<6x512xf32>,
    return
  }
  func.func @transform_0(%arg0: i32) -> (i32, i32) {
    %c0_i32 = arith.constant 0 : i32
    %c0_i32_0 = arith.constant 0 : i32
    %c0_i32_1 = arith.constant 0 : i32
    return %c0_i32, %c0_i32_0 : i32, i32
  }
  func.func @transform_1(%arg0: i32) -> (i32, i32) {
    %c0_i32 = arith.constant 0 : i32
    %c0_i32_0 = arith.constant 0 : i32
    %c0_i32_1 = arith.constant 0 : i32
    return %c0_i32, %c0_i32_0 : i32, i32
  }
  func.func @transform_2(%arg0: i32) -> (i32, i32) {
    %c0_i32 = arith.constant 0 : i32
    %c0_i32_0 = arith.constant 0 : i32
    %c0_i32_1 = arith.constant 0 : i32
    return %c0_i32, %c0_i32_0 : i32, i32
  }
  func.func @transform_3(%arg0: i32) -> (i32, i32) {
    %c0_i32 = arith.constant 0 : i32
    %c0_i32_0 = arith.constant 0 : i32
    %c0_i32_1 = arith.constant 0 : i32
    return %c0_i32, %c0_i32_0 : i32, i32
  }
  func.func @transform_4(%arg0: i32) -> (i32, i32) {
    %c0_i32 = arith.constant 0 : i32
    %c0_i32_0 = arith.constant 0 : i32
    %c0_i32_1 = arith.constant 0 : i32
    return %c0_i32, %c0_i32_0 : i32, i32
  }
  func.func @transform_5(%arg0: i32) -> (i32, i32) {
    %c0_i32 = arith.constant 0 : i32
    %c0_i32_0 = arith.constant 0 : i32
    %c0_i32_1 = arith.constant 0 : i32
    return %c0_i32, %c0_i32_0 : i32, i32
  }
  func.func @transform_6(%arg0: i32) -> (i32, i32) {
    %c0_i32 = arith.constant 0 : i32
    %c0_i32_0 = arith.constant 0 : i32
    %c0_i32_1 = arith.constant 0 : i32
    return %c0_i32, %c0_i32_0 : i32, i32
  }
  func.func @transform_7(%arg0: i32) -> (i32, i32) {
    %c0_i32 = arith.constant 0 : i32
    %c0_i32_0 = arith.constant 0 : i32
    %c0_i32_1 = arith.constant 0 : i32
    return %c0_i32, %c0_i32_0 : i32, i32
  }
  func.func @transform_8(%arg0: i32) -> (i32, i32) {
    %c0_i32 = arith.constant 0 : i32
    %c0_i32_0 = arith.constant 0 : i32
    %c0_i32_1 = arith.constant 0 : i32
    return %c0_i32, %c0_i32_0 : i32, i32
  }
  func.func @transform_9(%arg0: i32) -> (i32, i32) {
    %c0_i32 = arith.constant 0 : i32
    %c0_i32_0 = arith.constant 0 : i32
    %c0_i32_1 = arith.constant 0 : i32
    return %c0_i32, %c0_i32_0 : i32, i32
  }
  func.func @transform_10(%arg0: i32) -> (i32, i32) {
    %c0_i32 = arith.constant 0 : i32
    %c0_i32_0 = arith.constant 0 : i32
    %c0_i32_1 = arith.constant 0 : i32
    return %c0_i32, %c0_i32_0 : i32, i32
  }
  func.func @transform_11(%arg0: i32) -> (i32, i32) {
    %c0_i32 = arith.constant 0 : i32
    %c0_i32_0 = arith.constant 0 : i32
    %c0_i32_1 = arith.constant 0 : i32
    return %c0_i32, %c0_i32_0 : i32, i32
  }
}

</mosaic_0001>

<llo_original>
// kernel: tpu_custom_call.1
$region0: #{tpu_custom_call.1}
  #allocation0 [shape = 'u32[]', space=smem, size = 0x4, offset = 0x4, fixed_abs, tag = 'smem constant byte address 0x4 - core index']
  #allocation1 [shape = 'u32[144,128]{1,0:T(1,128)}', space=vmem, size = 0x12000, scoped, tag = 'internal scratch']
  %s0 = inlined_call_operand.hbm [shape: f32[6,192], index: 0, kind: input, shape index: {}]
  %s1 = inlined_call_operand.hbm [shape: f32[192,256], index: 1, kind: input, shape index: {}]
  %s2 = inlined_call_operand.vmem [shape: f32[1,256], index: 2, kind: input, shape index: {}]
  %s3 = inlined_call_operand.hbm [shape: f32[6,192], index: 3, kind: input, shape index: {}]
  %s4 = inlined_call_operand.hbm [shape: f32[192,128], index: 4, kind: input, shape index: {}]
  %s5 = inlined_call_operand.vmem [shape: f32[1,128], index: 5, kind: input, shape index: {}]
  %s6 = inlined_call_operand.hbm [shape: f32[6,192], index: 6, kind: input, shape index: {}]
  %s7 = inlined_call_operand.hbm [shape: f32[192,512], index: 7, kind: input, shape index: {}]
  %s8 = inlined_call_operand.vmem [shape: f32[1,512], index: 8, kind: input, shape index: {}]
  %s9 = inlined_call_operand.hbm [shape: f32[6,256], index: 9, kind: output, shape index: {0}]
  %s10 = inlined_call_operand.hbm [shape: f32[6,128], index: 10, kind: output, shape index: {1}]
  %s11 = inlined_call_operand.hbm [shape: f32[6,512], index: 11, kind: output, shape index: {2}]
  %12 = xla_tuple %s9, %s10, %s11
  %s13 = sld [smem:[#allocation0]]
  $region86: #{tpu_custom_call.1} parent=0
    _
  %s15 = ssub.s32 1, %s13
  %s16 = scalar_select 0, %s15, %s13
  $region1: #{tpu_custom_call.1} parent=0
    #allocation2 [shape = 'u8[8192]{0}', space=vmem, size = 0x2000, scoped, tag = 'input window, operand 0, single buffered']
    #allocation3 [shape = 's32[1]{0}', space=sflag, size = 0x4, scoped, tag = 'scoped memory for tpu_custom_call.1']
    #allocation4 [shape = 's32[1]{0}', space=sflag, size = 0x4, scoped, tag = 'scoped memory for tpu_custom_call.1']
    #allocation5 [shape = 'u8[196608]{0}', space=vmem, size = 0x30000, scoped, tag = 'input window, operand 1, single buffered']
    #allocation6 [shape = 's32[1]{0}', space=sflag, size = 0x4, scoped, tag = 'scoped memory for tpu_custom_call.1']
    #allocation7 [shape = 'u8[8192]{0}', space=vmem, size = 0x2000, scoped, tag = 'input window, operand 3, single buffered']
    #allocation8 [shape = 'u8[98304]{0}', space=vmem, size = 0x18000, scoped, tag = 'input window, operand 4, single buffered']
    #allocation9 [shape = 's32[1]{0}', space=sflag, size = 0x4, scoped, tag = 'scoped memory for tpu_custom_call.1']
    #allocation10 [shape = 'u8[8192]{0}', space=vmem, size = 0x2000, scoped, tag = 'input window, operand 6, single buffered']
    #allocation11 [shape = 'u8[393216]{0}', space=vmem, size = 0x60000, scoped, tag = 'input window, operand 7, single buffered']
    #allocation12 [shape = 's32[1]{0}', space=sflag, size = 0x4, scoped, tag = 'scoped memory for tpu_custom_call.1']
    #allocation13 [shape = 'u8[8192]{0}', space=vmem, size = 0x2000, scoped, tag = 'output window, operand 0, single buffered']
    #allocation14 [shape = 'u8[4096]{0}', space=vmem, size = 0x1000, scoped, tag = 'output window, operand 1, single buffered']
    #allocation15 [shape = 's32[1]{0}', space=sflag, size = 0x4, scoped, tag = 'scoped memory for tpu_custom_call.1']
    #allocation16 [shape = 'u8[16384]{0}', space=vmem, size = 0x4000, scoped, tag = 'output window, operand 2, single buffered']
    %17 = vsyncpa [#allocation3], 0
    %18 = vsyncpa [#allocation6], 0
    %19 = vsyncpa [#allocation9], 0
    %20 = vsyncpa [#allocation12], 0
    %21 = vsyncpa [#allocation4], 0
    %22 = vsyncpa [#allocation15], 0
    // Predicated region
    $region2: #{tpu_custom_call.1} parent=1 // pred_check
      _
    $region3: #{tpu_custom_call.1} parent=1 // pred_check_branch
      %24 = sbr.rel (0) target = $region5
    $region4: #{tpu_custom_call.1} parent=1 // pred_region
      %s26 = ssub.s32 256, 256
      %27 = vsyncadd [#allocation3], %s26
      %s29 = sshll.u32 [#allocation2], 4
      %s30 = int_to_ptr.vmem [resolvable:$true] %s29
      %32 = dma.hbm_to_vmem [thread:$0]  %s0, 256, %s30, [#allocation3]
    $region5: #{tpu_custom_call.1} parent=1 // pred_fallthru
      _
    // Predicated region
    $region6: #{tpu_custom_call.1} parent=1 // pred_check
      _
    $region7: #{tpu_custom_call.1} parent=1 // pred_check_branch
      %34 = sbr.rel (0) target = $region9
    $region8: #{tpu_custom_call.1} parent=1 // pred_region
      %s36 = ssub.s32 6144, 6144
      %37 = vsyncadd [#allocation6], %s36
      %s38 = sshll.u32 [#allocation5], 4
      %s39 = int_to_ptr.vmem [resolvable:$true] %s38
      %44 = dma.hbm_to_vmem [thread:$0]  %s1, 6144, %s39, [#allocation6], 256, 256, 16
    $region9: #{tpu_custom_call.1} parent=1 // pred_fallthru
      _
    // Predicated region
    $region10: #{tpu_custom_call.1} parent=1 // pred_check
      _
    $region11: #{tpu_custom_call.1} parent=1 // pred_check_branch
      %46 = sbr.rel (0) target = $region13
    $region12: #{tpu_custom_call.1} parent=1 // pred_region
      _
    $region13: #{tpu_custom_call.1} parent=1 // pred_fallthru
      _
    // Predicated region
    $region14: #{tpu_custom_call.1} parent=1 // pred_check
      _
    $region15: #{tpu_custom_call.1} parent=1 // pred_check_branch
      %48 = sbr.rel (0) target = $region17
    $region16: #{tpu_custom_call.1} parent=1 // pred_region
      %s50 = ssub.s32 256, 256
      %51 = vsyncadd [#allocation6], %s50
      %s53 = sshll.u32 [#allocation7], 4
      %s54 = int_to_ptr.vmem [resolvable:$true] %s53
      %56 = dma.hbm_to_vmem [thread:$0]  %s3, 256, %s54, [#allocation6]
    $region17: #{tpu_custom_call.1} parent=1 // pred_fallthru
      _
    // Predicated region
    $region18: #{tpu_custom_call.1} parent=1 // pred_check
      _
    $region19: #{tpu_custom_call.1} parent=1 // pred_check_branch
      %58 = sbr.rel (0) target = $region21
    $region20: #{tpu_custom_call.1} parent=1 // pred_region
      %s60 = ssub.s32 3072, 3072
      %61 = vsyncadd [#allocation9], %s60
      %s62 = sshll.u32 [#allocation8], 4
      %s63 = int_to_ptr.vmem [resolvable:$true] %s62
      %68 = dma.hbm_to_vmem [thread:$0]  %s4, 3072, %s63, [#allocation9], 128, 128, 8
    $region21: #{tpu_custom_call.1} parent=1 // pred_fallthru
      _
    // Predicated region
    $region22: #{tpu_custom_call.1} parent=1 // pred_check
      _
    $region23: #{tpu_custom_call.1} parent=1 // pred_check_branch
      %70 = sbr.rel (0) target = $region25
    $region24: #{tpu_custom_call.1} parent=1 // pred_region
      _
    $region25: #{tpu_custom_call.1} parent=1 // pred_fallthru
      _
    // Predicated region
    $region26: #{tpu_custom_call.1} parent=1 // pred_check
      _
    $region27: #{tpu_custom_call.1} parent=1 // pred_check_branch
      %72 = sbr.rel (0) target = $region29
    $region28: #{tpu_custom_call.1} parent=1 // pred_region
      %s74 = ssub.s32 256, 256
      %75 = vsyncadd [#allocation9], %s74
      %s77 = sshll.u32 [#allocation10], 4
      %s78 = int_to_ptr.vmem [resolvable:$true] %s77
      %80 = dma.hbm_to_vmem [thread:$0]  %s6, 256, %s78, [#allocation9]
    $region29: #{tpu_custom_call.1} parent=1 // pred_fallthru
      _
    // Predicated region
    $region30: #{tpu_custom_call.1} parent=1 // pred_check
      _
    $region31: #{tpu_custom_call.1} parent=1 // pred_check_branch
      %82 = sbr.rel (0) target = $region33
    $region32: #{tpu_custom_call.1} parent=1 // pred_region
      %s84 = ssub.s32 12288, 12288
      %85 = vsyncadd [#allocation12], %s84
      %s86 = sshll.u32 [#allocation11], 4
      %s87 = int_to_ptr.vmem [resolvable:$true] %s86
      %92 = dma.hbm_to_vmem [thread:$0]  %s7, 12288, %s87, [#allocation12], 512, 512, 32
    $region33: #{tpu_custom_call.1} parent=1 // pred_fallthru
      _
    // Predicated region
    $region34: #{tpu_custom_call.1} parent=1 // pred_check
      _
    $region35: #{tpu_custom_call.1} parent=1 // pred_check_branch
      %94 = sbr.rel (0) target = $region37
    $region36: #{tpu_custom_call.1} parent=1 // pred_region
      _
    $region37: #{tpu_custom_call.1} parent=1 // pred_fallthru
      _
    // Predicated region
    $region38: #{tpu_custom_call.1} parent=1 // pred_check
      _
    $region39: #{tpu_custom_call.1} parent=1 // pred_check_branch
      %96 = sbr.rel (0) target = $region41
    $region40: #{tpu_custom_call.1} parent=1 // pred_region
      %97 = dma.done [#allocation3], 256
    $region41: #{tpu_custom_call.1} parent=1 // pred_fallthru
      _
    // Predicated region
    $region42: #{tpu_custom_call.1} parent=1 // pred_check
      _
    $region43: #{tpu_custom_call.1} parent=1 // pred_check_branch
      %99 = sbr.rel (0) target = $region45
    $region44: #{tpu_custom_call.1} parent=1 // pred_region
      %100 = dma.done [#allocation6], 6144
    $region45: #{tpu_custom_call.1} parent=1 // pred_fallthru
      _
    // Predicated region
    $region46: #{tpu_custom_call.1} parent=1 // pred_check
      _
    $region47: #{tpu_custom_call.1} parent=1 // pred_check_branch
      %102 = sbr.rel (0) target = $region49
    $region48: #{tpu_custom_call.1} parent=1 // pred_region
      %103 = dma.done [#allocation6], 256
    $region49: #{tpu_custom_call.1} parent=1 // pred_fallthru
      _
    // Predicated region
    $region50: #{tpu_custom_call.1} parent=1 // pred_check
      _
    $region51: #{tpu_custom_call.1} parent=1 // pred_check_branch
      %105 = sbr.rel (0) target = $region53
    $region52: #{tpu_custom_call.1} parent=1 // pred_region
      %106 = dma.done [#allocation9], 3072
    $region53: #{tpu_custom_call.1} parent=1 // pred_fallthru
      _
    // Predicated region
    $region54: #{tpu_custom_call.1} parent=1 // pred_check
      _
    $region55: #{tpu_custom_call.1} parent=1 // pred_check_branch
      %108 = sbr.rel (0) target = $region57
    $region56: #{tpu_custom_call.1} parent=1 // pred_region
      %109 = dma.done [#allocation9], 256
    $region57: #{tpu_custom_call.1} parent=1 // pred_fallthru
      _
    // Predicated region
    $region58: #{tpu_custom_call.1} parent=1 // pred_check
      _
    $region59: #{tpu_custom_call.1} parent=1 // pred_check_branch
      %111 = sbr.rel (0) target = $region61
    $region60: #{tpu_custom_call.1} parent=1 // pred_region
      %112 = dma.done [#allocation12], 12288
    $region61: #{tpu_custom_call.1} parent=1 // pred_fallthru
      _
    %v113 = vld [vmem:[#allocation2] sm:$0x3f]
    %v114 = vld [vmem:[#allocation2 + $0x8] sm:$0x3f]
    %v115 = vld [vmem:[#allocation5] sm:$0xff]
    %v116 = vld [vmem:[#allocation5 + $0x8] sm:$0xff]
    %v117 = vld [vmem:[#allocation5 + $0x10] sm:$0xff]
    %v118 = vld [vmem:[#allocation5 + $0x18] sm:$0xff]
    %v119 = vld [vmem:[#allocation5 + $0x20] sm:$0xff]
    %v120 = vld [vmem:[#allocation5 + $0x28] sm:$0xff]
    %v121 = vld [vmem:[#allocation5 + $0x30] sm:$0xff]
    %v122 = vld [vmem:[#allocation5 + $0x38] sm:$0xff]
    %v123 = vld [vmem:[#allocation5 + $0x40] sm:$0xff]
    %v124 = vld [vmem:[#allocation5 + $0x48] sm:$0xff]
    %v125 = vld [vmem:[#allocation5 + $0x50] sm:$0xff]
    %v126 = vld [vmem:[#allocation5 + $0x58] sm:$0xff]
    %v127 = vld [vmem:[#allocation5 + $0x60] sm:$0xff]
    %v128 = vld [vmem:[#allocation5 + $0x68] sm:$0xff]
    %v129 = vld [vmem:[#allocation5 + $0x70] sm:$0xff]
    %v130 = vld [vmem:[#allocation5 + $0x78] sm:$0xff]
    %v131 = vld [vmem:[#allocation5 + $0x80] sm:$0xff]
    %v132 = vld [vmem:[#allocation5 + $0x88] sm:$0xff]
    %v133 = vld [vmem:[#allocation5 + $0x90] sm:$0xff]
    %v134 = vld [vmem:[#allocation5 + $0x98] sm:$0xff]
    %v135 = vld [vmem:[#allocation5 + $0xa0] sm:$0xff]
    %v136 = vld [vmem:[#allocation5 + $0xa8] sm:$0xff]
    %v137 = vld [vmem:[#allocation5 + $0xb0] sm:$0xff]
    %v138 = vld [vmem:[#allocation5 + $0xb8] sm:$0xff]
    %v139 = vld [vmem:[#allocation5 + $0xc0] sm:$0xff]
    %v140 = vld [vmem:[#allocation5 + $0xc8] sm:$0xff]
    %v141 = vld [vmem:[#allocation5 + $0xd0] sm:$0xff]
    %v142 = vld [vmem:[#allocation5 + $0xd8] sm:$0xff]
    %v143 = vld [vmem:[#allocation5 + $0xe0] sm:$0xff]
    %v144 = vld [vmem:[#allocation5 + $0xe8] sm:$0xff]
    %v145 = vld [vmem:[#allocation5 + $0xf0] sm:$0xff]
    %v146 = vld [vmem:[#allocation5 + $0xf8] sm:$0xff]
    %v147 = vld [vmem:[#allocation5 + $0x100] sm:$0xff]
    %v148 = vld [vmem:[#allocation5 + $0x108] sm:$0xff]
    %v149 = vld [vmem:[#allocation5 + $0x110] sm:$0xff]
    %v150 = vld [vmem:[#allocation5 + $0x118] sm:$0xff]
    %v151 = vld [vmem:[#allocation5 + $0x120] sm:$0xff]
    %v152 = vld [vmem:[#allocation5 + $0x128] sm:$0xff]
    %v153 = vld [vmem:[#allocation5 + $0x130] sm:$0xff]
    %v154 = vld [vmem:[#allocation5 + $0x138] sm:$0xff]
    %v155 = vld [vmem:[#allocation5 + $0x140] sm:$0xff]
    %v156 = vld [vmem:[#allocation5 + $0x148] sm:$0xff]
    %v157 = vld [vmem:[#allocation5 + $0x150] sm:$0xff]
    %v158 = vld [vmem:[#allocation5 + $0x158] sm:$0xff]
    %v159 = vld [vmem:[#allocation5 + $0x160] sm:$0xff]
    %v160 = vld [vmem:[#allocation5 + $0x168] sm:$0xff]
    %v161 = vld [vmem:[#allocation5 + $0x170] sm:$0xff]
    %v162 = vld [vmem:[#allocation5 + $0x178] sm:$0xff]
    %v163 = vld [vmem:[%s2] sm:$0x3]
    %v165 = vlaneseq
    %v166 = vshrl.u32 %v165, 7
    %v167 = vsub.s32 0, %v166
    %v168 = vrot.slane %v163, %v167
    %v169 = vlaneseq
    %v170 = vshrl.u32 %v169, 7
    %v171 = vsub.s32 1, %v170
    %v172 = vrot.slane %v163, %v171
    %vm175 = vcmask 523264
    %v177 = vsel %vm175, %v114, 0
    %179 = vmatprep.subr.mxu0 %v146
    %180 = vmatpush1.msra.mxu0 %v145
    %181 = vmatprep.subr.mxu0 %v144
    %182 = vmatpush1.msra.mxu0 %v143
    %183 = vmatprep.subr.mxu0 %v142
    %184 = vmatpush1.msra.mxu0 %v141
    %185 = vmatprep.subr.mxu0 %v140
    %186 = vmatpush1.msra.mxu0 %v139
    %187 = vmatprep.subr.mxu0 %v138
    %188 = vmatpush1.msra.mxu0 %v137
    %189 = vmatprep.subr.mxu0 %v136
    %190 = vmatpush1.msra.mxu0 %v135
    %191 = vmatprep.subr.mxu0 %v134
    %192 = vmatpush1.msra.mxu0 %v133
    %193 = vmatprep.subr.mxu0 %v132
    %194 = vmatpush1.msra.mxu0 %v131
    %195 = vmatprep.subr.mxu0 %v130
    %196 = vmatpush1.msra.mxu0 %v129
    %197 = vmatprep.subr.mxu0 %v128
    %198 = vmatpush1.msra.mxu0 %v127
    %199 = vmatprep.subr.mxu0 %v126
    %200 = vmatpush1.msra.mxu0 %v125
    %201 = vmatprep.subr.mxu0 %v124
    %202 = vmatpush1.msra.mxu0 %v123
    %203 = vmatprep.subr.mxu0 %v122
    %204 = vmatpush1.msra.mxu0 %v121
    %205 = vmatprep.subr.mxu0 %v120
    %206 = vmatpush1.msra.mxu0 %v119
    %207 = vmatprep.subr.mxu0 %v118
    %208 = vmatpush1.msra.mxu0 %v117
    %209 = vmatprep.subr.mxu0 %v116
    %210 = vmatpush1.msra.mxu0 %v115
    %211 = vmatprep.subr.mxu0 0.0
    %212 = vmatpush2.msra.mxu0 0.0
    %213 = vmatprep.subr.mxu0 0.0
    %214 = vmatpush2.msra.mxu0 0.0
    %215 = vmatprep.subr.mxu0 0.0
    %216 = vmatpush2.msra.mxu0 0.0
    %217 = vmatprep.subr.mxu0 0.0
    %218 = vmatpush2.msra.mxu0 0.0
    %219 = vmatprep.subr.mxu0 0.0
    %220 = vmatpush2.msra.mxu0 0.0
    %221 = vmatprep.subr.mxu0 0.0
    %222 = vmatpush2.msra.mxu0 0.0
    %223 = vmatprep.subr.mxu0 0.0
    %224 = vmatpush2.msra.mxu0 0.0
    %225 = vmatprep.subr.mxu0 0.0
    %226 = vmatpush2.msra.mxu0 0.0
    %227 = vmatprep.subr.mxu0 %v162
    %228 = vmatpush2.msra.mxu0 %v161
    %229 = vmatprep.subr.mxu0 %v160
    %230 = vmatpush2.msra.mxu0 %v159
    %231 = vmatprep.subr.mxu0 %v158
    %232 = vmatpush2.msra.mxu0 %v157
    %233 = vmatprep.subr.mxu0 %v156
    %234 = vmatpush2.msra.mxu0 %v155
    %235 = vmatprep.subr.mxu0 %v154
    %236 = vmatpush2.msra.mxu0 %v153
    %237 = vmatprep.subr.mxu0 %v152
    %238 = vmatpush2.msra.mxu0 %v151
    %239 = vmatprep.subr.mxu0 %v150
    %240 = vmatpush2.msra.mxu0 %v149
    %241 = vmatprep.subr.mxu0 %v148
    %242 = vmatpush2.msra.mxu0 %v147
    %243 = vmatprep.mubr.f32.mxu0 %v177
    %244 = vmatmul.mubr.f32.gmra.mxu0 %v113
    %v245 = vpop.f32.mrf.mxu0
    %v246 = vadd.f32 %v168, %v245
    %v247 = vpop.f32.mrf.mxu0
    %v248 = vadd.f32 %v172, %v247
    %249 = vdwg.mxu0
    %250 = vst [vmem:[#allocation13] sm:$0x3f] %v246
    %251 = vst [vmem:[#allocation13 + $0x8] sm:$0x3f] %v248
    %v252 = vld [vmem:[#allocation7] sm:$0x3f]
    %v253 = vld [vmem:[#allocation7 + $0x8] sm:$0x3f]
    %v254 = vld [vmem:[#allocation8] sm:$0xff]
    %v255 = vld [vmem:[#allocation8 + $0x8] sm:$0xff]
    %v256 = vld [vmem:[#allocation8 + $0x10] sm:$0xff]
    %v257 = vld [vmem:[#allocation8 + $0x18] sm:$0xff]
    %v258 = vld [vmem:[#allocation8 + $0x20] sm:$0xff]
    %v259 = vld [vmem:[#allocation8 + $0x28] sm:$0xff]
    %v260 = vld [vmem:[#allocation8 + $0x30] sm:$0xff]
    %v261 = vld [vmem:[#allocation8 + $0x38] sm:$0xff]
    %v262 = vld [vmem:[#allocation8 + $0x40] sm:$0xff]
    %v263 = vld [vmem:[#allocation8 + $0x48] sm:$0xff]
    %v264 = vld [vmem:[#allocation8 + $0x50] sm:$0xff]
    %v265 = vld [vmem:[#allocation8 + $0x58] sm:$0xff]
    %v266 = vld [vmem:[#allocation8 + $0x60] sm:$0xff]
    %v267 = vld [vmem:[#allocation8 + $0x68] sm:$0xff]
    %v268 = vld [vmem:[#allocation8 + $0x70] sm:$0xff]
    %v269 = vld [vmem:[#allocation8 + $0x78] sm:$0xff]
    %v270 = vld [vmem:[#allocation8 + $0x80] sm:$0xff]
    %v271 = vld [vmem:[#allocation8 + $0x88] sm:$0xff]
    %v272 = vld [vmem:[#allocation8 + $0x90] sm:$0xff]
    %v273 = vld [vmem:[#allocation8 + $0x98] sm:$0xff]
    %v274 = vld [vmem:[#allocation8 + $0xa0] sm:$0xff]
    %v275 = vld [vmem:[#allocation8 + $0xa8] sm:$0xff]
    %v276 = vld [vmem:[#allocation8 + $0xb0] sm:$0xff]
    %v277 = vld [vmem:[#allocation8 + $0xb8] sm:$0xff]
    %v278 = vld [vmem:[%s5] sm:$0x1]
    %v280 = vlaneseq
    %v281 = vshrl.u32 %v280, 7
    %v282 = vsub.s32 0, %v281
    %v283 = vrot.slane %v278, %v282
    %v286 = vsel %vm175, %v253, 0
    %288 = vmatprep.subr.mxu0 0.0
    %289 = vmatpush1.msra.mxu0 %v269
    %290 = vmatprep.subr.mxu0 0.0
    %291 = vmatpush1.msra.mxu0 %v268
    %292 = vmatprep.subr.mxu0 0.0
    %293 = vmatpush1.msra.mxu0 %v267
    %294 = vmatprep.subr.mxu0 0.0
    %295 = vmatpush1.msra.mxu0 %v266
    %296 = vmatprep.subr.mxu0 0.0
    %297 = vmatpush1.msra.mxu0 %v265
    %298 = vmatprep.subr.mxu0 0.0
    %299 = vmatpush1.msra.mxu0 %v264
    %300 = vmatprep.subr.mxu0 0.0
    %301 = vmatpush1.msra.mxu0 %v263
    %302 = vmatprep.subr.mxu0 0.0
    %303 = vmatpush1.msra.mxu0 %v262
    %304 = vmatprep.subr.mxu0 0.0
    %305 = vmatpush1.msra.mxu0 %v261
    %306 = vmatprep.subr.mxu0 0.0
    %307 = vmatpush1.msra.mxu0 %v260
    %308 = vmatprep.subr.mxu0 0.0
    %309 = vmatpush1.msra.mxu0 %v259
    %310 = vmatprep.subr.mxu0 0.0
    %311 = vmatpush1.msra.mxu0 %v258
    %312 = vmatprep.subr.mxu0 0.0
    %313 = vmatpush1.msra.mxu0 %v257
    %314 = vmatprep.subr.mxu0 0.0
    %315 = vmatpush1.msra.mxu0 %v256
    %316 = vmatprep.subr.mxu0 0.0
    %317 = vmatpush1.msra.mxu0 %v255
    %318 = vmatprep.subr.mxu0 0.0
    %319 = vmatpush1.msra.mxu0 %v254
    %320 = vmatprep.subr.mxu0 0.0
    %321 = vmatpush2.msra.mxu0 0.0
    %322 = vmatprep.subr.mxu0 0.0
    %323 = vmatpush2.msra.mxu0 0.0
    %324 = vmatprep.subr.mxu0 0.0
    %325 = vmatpush2.msra.mxu0 0.0
    %326 = vmatprep.subr.mxu0 0.0
    %327 = vmatpush2.msra.mxu0 0.0
    %328 = vmatprep.subr.mxu0 0.0
    %329 = vmatpush2.msra.mxu0 0.0
    %330 = vmatprep.subr.mxu0 0.0
    %331 = vmatpush2.msra.mxu0 0.0
    %332 = vmatprep.subr.mxu0 0.0
    %333 = vmatpush2.msra.mxu0 0.0
    %334 = vmatprep.subr.mxu0 0.0
    %335 = vmatpush2.msra.mxu0 0.0
    %336 = vmatprep.subr.mxu0 0.0
    %337 = vmatpush2.msra.mxu0 %v277
    %338 = vmatprep.subr.mxu0 0.0
    %339 = vmatpush2.msra.mxu0 %v276
    %340 = vmatprep.subr.mxu0 0.0
    %341 = vmatpush2.msra.mxu0 %v275
    %342 = vmatprep.subr.mxu0 0.0
    %343 = vmatpush2.msra.mxu0 %v274
    %344 = vmatprep.subr.mxu0 0.0
    %345 = vmatpush2.msra.mxu0 %v273
    %346 = vmatprep.subr.mxu0 0.0
    %347 = vmatpush2.msra.mxu0 %v272
    %348 = vmatprep.subr.mxu0 0.0
    %349 = vmatpush2.msra.mxu0 %v271
    %350 = vmatprep.subr.mxu0 0.0
    %351 = vmatpush2.msra.mxu0 %v270
    %352 = vmatprep.mubr.f32.mxu0 %v286
    %353 = vmatmul.mubr.f32.gmra.mxu0 %v252
    %v354 = vpop.f32.mrf.mxu0
    %v355 = vadd.f32 %v283, %v354
    %v356 = vpop.f32.mrf.mxu0
    %357 = vdwg.mxu0
    %358 = vst [vmem:[#allocation14] sm:$0x3f] %v355
    %v359 = vld [vmem:[#allocation10] sm:$0x3f]
    %v360 = vld [vmem:[#allocation10 + $0x8] sm:$0x3f]
    %v361 = vld [vmem:[#allocation11] sm:$0xff]
    %v362 = vld [vmem:[#allocation11 + $0x8] sm:$0xff]
    %v363 = vld [vmem:[#allocation11 + $0x10] sm:$0xff]
    %v364 = vld [vmem:[#allocation11 + $0x18] sm:$0xff]
    %v365 = vld [vmem:[#allocation11 + $0x20] sm:$0xff]
    %v366 = vld [vmem:[#allocation11 + $0x28] sm:$0xff]
    %v367 = vld [vmem:[#allocation11 + $0x30] sm:$0xff]
    %v368 = vld [vmem:[#allocation11 + $0x38] sm:$0xff]
    %v369 = vld [vmem:[#allocation11 + $0x40] sm:$0xff]
    %v370 = vld [vmem:[#allocation11 + $0x48] sm:$0xff]
    %v371 = vld [vmem:[#allocation11 + $0x50] sm:$0xff]
    %v372 = vld [vmem:[#allocation11 + $0x58] sm:$0xff]
    %v373 = vld [vmem:[#allocation11 + $0x60] sm:$0xff]
    %v374 = vld [vmem:[#allocation11 + $0x68] sm:$0xff]
    %v375 = vld [vmem:[#allocation11 + $0x70] sm:$0xff]
    %v376 = vld [vmem:[#allocation11 + $0x78] sm:$0xff]
    %v377 = vld [vmem:[#allocation11 + $0x80] sm:$0xff]
    %v378 = vld [vmem:[#allocation11 + $0x88] sm:$0xff]
    %v379 = vld [vmem:[#allocation11 + $0x90] sm:$0xff]
    %v380 = vld [vmem:[#allocation11 + $0x98] sm:$0xff]
    %v381 = vld [vmem:[#allocation11 + $0xa0] sm:$0xff]
    %v382 = vld [vmem:[#allocation11 + $0xa8] sm:$0xff]
    %v383 = vld [vmem:[#allocation11 + $0xb0] sm:$0xff]
    %v384 = vld [vmem:[#allocation11 + $0xb8] sm:$0xff]
    %v385 = vld [vmem:[#allocation11 + $0xc0] sm:$0xff]
    %v386 = vld [vmem:[#allocation11 + $0xc8] sm:$0xff]
    %v387 = vld [vmem:[#allocation11 + $0xd0] sm:$0xff]
    %v388 = vld [vmem:[#allocation11 + $0xd8] sm:$0xff]
    %v389 = vld [vmem:[#allocation11 + $0xe0] sm:$0xff]
    %v390 = vld [vmem:[#allocation11 + $0xe8] sm:$0xff]
    %v391 = vld [vmem:[#allocation11 + $0xf0] sm:$0xff]
    %v392 = vld [vmem:[#allocation11 + $0xf8] sm:$0xff]
    %v393 = vld [vmem:[#allocation11 + $0x100] sm:$0xff]
    %v394 = vld [vmem:[#allocation11 + $0x108] sm:$0xff]
    %v395 = vld [vmem:[#allocation11 + $0x110] sm:$0xff]
    %v396 = vld [vmem:[#allocation11 + $0x118] sm:$0xff]
    %v397 = vld [vmem:[#allocation11 + $0x120] sm:$0xff]
    %v398 = vld [vmem:[#allocation11 + $0x128] sm:$0xff]
    %v399 = vld [vmem:[#allocation11 + $0x130] sm:$0xff]
    %v400 = vld [vmem:[#allocation11 + $0x138] sm:$0xff]
    %v401 = vld [vmem:[#allocation11 + $0x140] sm:$0xff]
    %v402 = vld [vmem:[#allocation11 + $0x148] sm:$0xff]
    %v403 = vld [vmem:[#allocation11 + $0x150] sm:$0xff]
    %v404 = vld [vmem:[#allocation11 + $0x158] sm:$0xff]
    %v405 = vld [vmem:[#allocation11 + $0x160] sm:$0xff]
    %v406 = vld [vmem:[#allocation11 + $0x168] sm:$0xff]
    %v407 = vld [vmem:[#allocation11 + $0x170] sm:$0xff]
    %v408 = vld [vmem:[#allocation11 + $0x178] sm:$0xff]
    %v409 = vld [vmem:[#allocation11 + $0x180] sm:$0xff]
    %v410 = vld [vmem:[#allocation11 + $0x188] sm:$0xff]
    %v411 = vld [vmem:[#allocation11 + $0x190] sm:$0xff]
    %v412 = vld [vmem:[#allocation11 + $0x198] sm:$0xff]
    %v413 = vld [vmem:[#allocation11 + $0x1a0] sm:$0xff]
    %v414 = vld [vmem:[#allocation11 + $0x1a8] sm:$0xff]
    %v415 = vld [vmem:[#allocation11 + $0x1b0] sm:$0xff]
    %v416 = vld [vmem:[#allocation11 + $0x1b8] sm:$0xff]
    %v417 = vld [vmem:[#allocation11 + $0x1c0] sm:$0xff]
    %v418 = vld [vmem:[#allocation11 + $0x1c8] sm:$0xff]
    %v419 = vld [vmem:[#allocation11 + $0x1d0] sm:$0xff]
    %v420 = vld [vmem:[#allocation11 + $0x1d8] sm:$0xff]
    %v421 = vld [vmem:[#allocation11 + $0x1e0] sm:$0xff]
    %v422 = vld [vmem:[#allocation11 + $0x1e8] sm:$0xff]
    %v423 = vld [vmem:[#allocation11 + $0x1f0] sm:$0xff]
    %v424 = vld [vmem:[#allocation11 + $0x1f8] sm:$0xff]
    %v425 = vld [vmem:[#allocation11 + $0x200] sm:$0xff]
    %v426 = vld [vmem:[#allocation11 + $0x208] sm:$0xff]
    %v427 = vld [vmem:[#allocation11 + $0x210] sm:$0xff]
    %v428 = vld [vmem:[#allocation11 + $0x218] sm:$0xff]
    %v429 = vld [vmem:[#allocation11 + $0x220] sm:$0xff]
    %v430 = vld [vmem:[#allocation11 + $0x228] sm:$0xff]
    %v431 = vld [vmem:[#allocation11 + $0x230] sm:$0xff]
    %v432 = vld [vmem:[#allocation11 + $0x238] sm:$0xff]
    %v433 = vld [vmem:[#allocation11 + $0x240] sm:$0xff]
    %v434 = vld [vmem:[#allocation11 + $0x248] sm:$0xff]
    %v435 = vld [vmem:[#allocation11 + $0x250] sm:$0xff]
    %v436 = vld [vmem:[#allocation11 + $0x258] sm:$0xff]
    %v437 = vld [vmem:[#allocation11 + $0x260] sm:$0xff]
    %v438 = vld [vmem:[#allocation11 + $0x268] sm:$0xff]
    %v439 = vld [vmem:[#allocation11 + $0x270] sm:$0xff]
    %v440 = vld [vmem:[#allocation11 + $0x278] sm:$0xff]
    %v441 = vld [vmem:[#allocation11 + $0x280] sm:$0xff]
    %v442 = vld [vmem:[#allocation11 + $0x288] sm:$0xff]
    %v443 = vld [vmem:[#allocation11 + $0x290] sm:$0xff]
    %v444 = vld [vmem:[#allocation11 + $0x298] sm:$0xff]
    %v445 = vld [vmem:[#allocation11 + $0x2a0] sm:$0xff]
    %v446 = vld [vmem:[#allocation11 + $0x2a8] sm:$0xff]
    %v447 = vld [vmem:[#allocation11 + $0x2b0] sm:$0xff]
    %v448 = vld [vmem:[#allocation11 + $0x2b8] sm:$0xff]
    %v449 = vld [vmem:[#allocation11 + $0x2c0] sm:$0xff]
    %v450 = vld [vmem:[#allocation11 + $0x2c8] sm:$0xff]
    %v451 = vld [vmem:[#allocation11 + $0x2d0] sm:$0xff]
    %v452 = vld [vmem:[#allocation11 + $0x2d8] sm:$0xff]
    %v453 = vld [vmem:[#allocation11 + $0x2e0] sm:$0xff]
    %v454 = vld [vmem:[#allocation11 + $0x2e8] sm:$0xff]
    %v455 = vld [vmem:[#allocation11 + $0x2f0] sm:$0xff]
    %v456 = vld [vmem:[#allocation11 + $0x2f8] sm:$0xff]
    %v457 = vld [vmem:[%s8] sm:$0xf]
    %v459 = vlaneseq
    %v460 = vshrl.u32 %v459, 7
    %v461 = vsub.s32 0, %v460
    %v462 = vrot.slane %v457, %v461
    %v463 = vlaneseq
    %v464 = vshrl.u32 %v463, 7
    %v465 = vsub.s32 1, %v464
    %v466 = vrot.slane %v457, %v465
    %v467 = vlaneseq
    %v468 = vshrl.u32 %v467, 7
    %v469 = vsub.s32 2, %v468
    %v470 = vrot.slane %v457, %v469
    %v471 = vlaneseq
    %v472 = vshrl.u32 %v471, 7
    %v473 = vsub.s32 3, %v472
    %v474 = vrot.slane %v457, %v473
    %v480 = vsel %vm175, %v360, 0
    %482 = vmatprep.subr.mxu0 %v422
    %483 = vmatpush1.msra.mxu0 %v421
    %484 = vmatprep.subr.mxu0 %v418
    %485 = vmatpush1.msra.mxu0 %v417
    %486 = vmatprep.subr.mxu0 %v414
    %487 = vmatpush1.msra.mxu0 %v413
    %488 = vmatprep.subr.mxu0 %v410
    %489 = vmatpush1.msra.mxu0 %v409
    %490 = vmatprep.subr.mxu0 %v406
    %491 = vmatpush1.msra.mxu0 %v405
    %492 = vmatprep.subr.mxu0 %v402
    %493 = vmatpush1.msra.mxu0 %v401
    %494 = vmatprep.subr.mxu0 %v398
    %495 = vmatpush1.msra.mxu0 %v397
    %496 = vmatprep.subr.mxu0 %v394
    %497 = vmatpush1.msra.mxu0 %v393
    %498 = vmatprep.subr.mxu0 %v390
    %499 = vmatpush1.msra.mxu0 %v389
    %500 = vmatprep.subr.mxu0 %v386
    %501 = vmatpush1.msra.mxu0 %v385
    %502 = vmatprep.subr.mxu0 %v382
    %503 = vmatpush1.msra.mxu0 %v381
    %504 = vmatprep.subr.mxu0 %v378
    %505 = vmatpush1.msra.mxu0 %v377
    %506 = vmatprep.subr.mxu0 %v374
    %507 = vmatpush1.msra.mxu0 %v373
    %508 = vmatprep.subr.mxu0 %v370
    %509 = vmatpush1.msra.mxu0 %v369
    %510 = vmatprep.subr.mxu0 %v366
    %511 = vmatpush1.msra.mxu0 %v365
    %512 = vmatprep.subr.mxu0 %v362
    %513 = vmatpush1.msra.mxu0 %v361
    %514 = vmatprep.subr.mxu0 0.0
    %515 = vmatpush2.msra.mxu0 0.0
    %516 = vmatprep.subr.mxu0 0.0
    %517 = vmatpush2.msra.mxu0 0.0
    %518 = vmatprep.subr.mxu0 0.0
    %519 = vmatpush2.msra.mxu0 0.0
    %520 = vmatprep.subr.mxu0 0.0
    %521 = vmatpush2.msra.mxu0 0.0
    %522 = vmatprep.subr.mxu0 0.0
    %523 = vmatpush2.msra.mxu0 0.0
    %524 = vmatprep.subr.mxu0 0.0
    %525 = vmatpush2.msra.mxu0 0.0
    %526 = vmatprep.subr.mxu0 0.0
    %527 = vmatpush2.msra.mxu0 0.0
    %528 = vmatprep.subr.mxu0 0.0
    %529 = vmatpush2.msra.mxu0 0.0
    %530 = vmatprep.subr.mxu0 %v454
    %531 = vmatpush2.msra.mxu0 %v453
    %532 = vmatprep.subr.mxu0 %v450
    %533 = vmatpush2.msra.mxu0 %v449
    %534 = vmatprep.subr.mxu0 %v446
    %535 = vmatpush2.msra.mxu0 %v445
    %536 = vmatprep.subr.mxu0 %v442
    %537 = vmatpush2.msra.mxu0 %v441
    %538 = vmatprep.subr.mxu0 %v438
    %539 = vmatpush2.msra.mxu0 %v437
    %540 = vmatprep.subr.mxu0 %v434
    %541 = vmatpush2.msra.mxu0 %v433
    %542 = vmatprep.subr.mxu0 %v430
    %543 = vmatpush2.msra.mxu0 %v429
    %544 = vmatprep.subr.mxu0 %v426
    %545 = vmatpush2.msra.mxu0 %v425
    %546 = vmatprep.mubr.f32.mxu0 %v480
    %547 = vmatmul.mubr.f32.gmra.mxu0 %v359
    %v548 = vpop.f32.mrf.mxu0
    %v549 = vadd.f32 %v462, %v548
    %v550 = vpop.f32.mrf.mxu0
    %v551 = vadd.f32 %v466, %v550
    %552 = vdwg.mxu0
    %553 = vmatprep.subr.mxu0 %v424
    %554 = vmatpush1.msra.mxu0 %v423
    %555 = vmatprep.subr.mxu0 %v420
    %556 = vmatpush1.msra.mxu0 %v419
    %557 = vmatprep.subr.mxu0 %v416
    %558 = vmatpush1.msra.mxu0 %v415
    %559 = vmatprep.subr.mxu0 %v412
    %560 = vmatpush1.msra.mxu0 %v411
    %561 = vmatprep.subr.mxu0 %v408
    %562 = vmatpush1.msra.mxu0 %v407
    %563 = vmatprep.subr.mxu0 %v404
    %564 = vmatpush1.msra.mxu0 %v403
    %565 = vmatprep.subr.mxu0 %v400
    %566 = vmatpush1.msra.mxu0 %v399
    %567 = vmatprep.subr.mxu0 %v396
    %568 = vmatpush1.msra.mxu0 %v395
    %569 = vmatprep.subr.mxu0 %v392
    %570 = vmatpush1.msra.mxu0 %v391
    %571 = vmatprep.subr.mxu0 %v388
    %572 = vmatpush1.msra.mxu0 %v387
    %573 = vmatprep.subr.mxu0 %v384
    %574 = vmatpush1.msra.mxu0 %v383
    %575 = vmatprep.subr.mxu0 %v380
    %576 = vmatpush1.msra.mxu0 %v379
    %577 = vmatprep.subr.mxu0 %v376
    %578 = vmatpush1.msra.mxu0 %v375
    %579 = vmatprep.subr.mxu0 %v372
    %580 = vmatpush1.msra.mxu0 %v371
    %581 = vmatprep.subr.mxu0 %v368
    %582 = vmatpush1.msra.mxu0 %v367
    %583 = vmatprep.subr.mxu0 %v364
    %584 = vmatpush1.msra.mxu0 %v363
    %585 = vmatprep.subr.mxu0 0.0
    %586 = vmatpush2.msra.mxu0 0.0
    %587 = vmatprep.subr.mxu0 0.0
    %588 = vmatpush2.msra.mxu0 0.0
    %589 = vmatprep.subr.mxu0 0.0
    %590 = vmatpush2.msra.mxu0 0.0
    %591 = vmatprep.subr.mxu0 0.0
    %592 = vmatpush2.msra.mxu0 0.0
    %593 = vmatprep.subr.mxu0 0.0
    %594 = vmatpush2.msra.mxu0 0.0
    %595 = vmatprep.subr.mxu0 0.0
    %596 = vmatpush2.msra.mxu0 0.0
    %597 = vmatprep.subr.mxu0 0.0
    %598 = vmatpush2.msra.mxu0 0.0
    %599 = vmatprep.subr.mxu0 0.0
    %600 = vmatpush2.msra.mxu0 0.0
    %601 = vmatprep.subr.mxu0 %v456
    %602 = vmatpush2.msra.mxu0 %v455
    %603 = vmatprep.subr.mxu0 %v452
    %604 = vmatpush2.msra.mxu0 %v451
    %605 = vmatprep.subr.mxu0 %v448
    %606 = vmatpush2.msra.mxu0 %v447
    %607 = vmatprep.subr.mxu0 %v444
    %608 = vmatpush2.msra.mxu0 %v443
    %609 = vmatprep.subr.mxu0 %v440
    %610 = vmatpush2.msra.mxu0 %v439
    %611 = vmatprep.subr.mxu0 %v436
    %612 = vmatpush2.msra.mxu0 %v435
    %613 = vmatprep.subr.mxu0 %v432
    %614 = vmatpush2.msra.mxu0 %v431
    %615 = vmatprep.subr.mxu0 %v428
    %616 = vmatpush2.msra.mxu0 %v427
    %617 = vmatprep.mubr.f32.mxu0 %v480
    %618 = vmatmul.mubr.f32.gmra.mxu0 %v359
    %v619 = vpop.f32.mrf.mxu0
    %v620 = vadd.f32 %v470, %v619
    %v621 = vpop.f32.mrf.mxu0
    %v622 = vadd.f32 %v474, %v621
    %623 = vdwg.mxu0
    %624 = vst [vmem:[#allocation16] sm:$0x3f] %v549
    %625 = vst [vmem:[#allocation16 + $0x8] sm:$0x3f] %v551
    %626 = vst [vmem:[#allocation16 + $0x10] sm:$0x3f] %v620
    %627 = vst [vmem:[#allocation16 + $0x18] sm:$0x3f] %v622
    // Predicated region
    $region62: #{tpu_custom_call.1} parent=1 // pred_check
      _
    $region63: #{tpu_custom_call.1} parent=1 // pred_check_branch
      %629 = sbr.rel (0) target = $region65
    $region64: #{tpu_custom_call.1} parent=1 // pred_region
      %s631 = ssub.s32 256, 256
      %632 = vsyncadd [#allocation4], %s631
      %s634 = sshll.u32 [#allocation13], 4
      %s635 = int_to_ptr.vmem [resolvable:$true] %s634
      %637 = dma.vmem_to_hbm [thread:$0]  %s635, 256, %s9, [#allocation4]
    $region65: #{tpu_custom_call.1} parent=1 // pred_fallthru
      _
    // Predicated region
    $region66: #{tpu_custom_call.1} parent=1 // pred_check
      _
    $region67: #{tpu_custom_call.1} parent=1 // pred_check_branch
      %639 = sbr.rel (0) target = $region69
    $region68: #{tpu_custom_call.1} parent=1 // pred_region
      %s641 = ssub.s32 128, 128
      %642 = vsyncadd [#allocation15], %s641
      %s644 = sshll.u32 [#allocation14], 4
      %s645 = int_to_ptr.vmem [resolvable:$true] %s644
      %647 = dma.vmem_to_hbm [thread:$0]  %s645, 128, %s10, [#allocation15]
    $region69: #{tpu_custom_call.1} parent=1 // pred_fallthru
      _
    // Predicated region
    $region70: #{tpu_custom_call.1} parent=1 // pred_check
      _
    $region71: #{tpu_custom_call.1} parent=1 // pred_check_branch
      %649 = sbr.rel (0) target = $region73
    $region72: #{tpu_custom_call.1} parent=1 // pred_region
      %s651 = ssub.s32 512, 512
      %652 = vsyncadd [#allocation15], %s651
      %s654 = sshll.u32 [#allocation16], 4
      %s655 = int_to_ptr.vmem [resolvable:$true] %s654
      %657 = dma.vmem_to_hbm [thread:$0]  %s655, 512, %s11, [#allocation15]
    $region73: #{tpu_custom_call.1} parent=1 // pred_fallthru
      _
    // Predicated region
    $region74: #{tpu_custom_call.1} parent=1 // pred_check
      _
    $region75: #{tpu_custom_call.1} parent=1 // pred_check_branch
      %659 = sbr.rel (0) target = $region77
    $region76: #{tpu_custom_call.1} parent=1 // pred_region
      %660 = dma.done [#allocation4], 256
    $region77: #{tpu_custom_call.1} parent=1 // pred_fallthru
      _
    // Predicated region
    $region78: #{tpu_custom_call.1} parent=1 // pred_check
      _
    $region79: #{tpu_custom_call.1} parent=1 // pred_check_branch
      %662 = sbr.rel (0) target = $region81
    $region80: #{tpu_custom_call.1} parent=1 // pred_region
      %663 = dma.done [#allocation15], 128
    $region81: #{tpu_custom_call.1} parent=1 // pred_fallthru
      _
    // Predicated region
    $region82: #{tpu_custom_call.1} parent=1 // pred_check
      _
    $region83: #{tpu_custom_call.1} parent=1 // pred_check_branch
      %665 = sbr.rel (0) target = $region85
    $region84: #{tpu_custom_call.1} parent=1 // pred_region
      %666 = dma.done [#allocation15], 512
    $region85: #{tpu_custom_call.1} parent=1 // pred_fallthru
      _
    %667 = vsyncpa [#allocation3], 1
    %668 = vsyncpa [#allocation6], 1
    %669 = vsyncpa [#allocation9], 1
    %670 = vsyncpa [#allocation12], 1
    %671 = vsyncpa [#allocation4], 1
    %672 = vsyncpa [#allocation15], 1

</llo_original>
